<compile_context>
chip_gen: v7x
topology: tpu7x:2x2x1
jax: 0.10.0
libtpu: 0.0.40
codegen_flags: <defaults>
</compile_context>

<pallas_src>
import functools

import jax
import jax.numpy as jnp
from jax.experimental import pallas as pl
from jax.experimental.pallas import tpu as pltpu

PAD = 128  # lane-padded feature width used for every activation in the kernel

# Row offsets of each (BN-folded, zero-padded, pre-transposed [in,out]) weight
# inside the single bf16 weight slab [W_ROWS, PAD].
_W_OFF = {
    "fc1":   0,     # [128,128]  real (66, 32)
    "fc2":   128,   # [128,128]  real (32, 16)
    "fc3":   256,   # [128,128]  real (16,  8)
    "sage1": 384,   # [256,128]  rows 0:8 = Wl (agg block), rows 128:136 = Wr
    "sage2": 640,
    "sage3": 896,
    "cls":   1152,  # [128,128]  real ( 8,  3)
}
W_ROWS = 1280
B_ROWS = 8          # 7 bias rows (fc1..3, sage1..3, cls), padded to 8 sublanes


# ----------------------------------------------------------------------------
# Pallas kernel: full fused forward.  4 inputs, 1 output, everything in VMEM.
# ----------------------------------------------------------------------------
def _gnn_forward_kernel(h0_ref, a_ref, w_ref, b_ref, out_ref):
    def leaky(x):                       # F.leaky_relu(x, 0.1), f32
        return jnp.where(x > 0, x, 0.1 * x)

    b = b_ref[...]                      # [8, 128] f32, BN already folded in
    a = a_ref[...]                      # [Np, Np] bf16 row-normalized adjacency

    def dense(h_bf16, off, bi):         # Linear (+folded BN) + leaky
        y = jnp.dot(h_bf16, w_ref[off:off + PAD, :],
                    preferred_element_type=jnp.float32)
        return leaky(y + b[bi:bi + 1, :])

    def sage(h_f32, off, bi):           # SAGEConv (+folded BN) + leaky, fused
        h_bf = h_f32.astype(jnp.bfloat16)
        agg = jnp.dot(a, h_bf, preferred_element_type=jnp.float32)   # mean aggr
        cat = jnp.concatenate([agg.astype(jnp.bfloat16), h_bf], axis=-1)
        y = jnp.dot(cat, w_ref[off:off + 2 * PAD, :],                # [Wl; Wr]
                    preferred_element_type=jnp.float32)
        return leaky(y + b[bi:bi + 1, :])

    h = dense(h0_ref[...], _W_OFF["fc1"], 0)                 # [Np,128] f32
    h = dense(h.astype(jnp.bfloat16), _W_OFF["fc2"], 1)
    h = dense(h.astype(jnp.bfloat16), _W_OFF["fc3"], 2)
    h = sage(h, _W_OFF["sage1"], 3)
    h = sage(h, _W_OFF["sage2"], 4)
    h = sage(h, _W_OFF["sage3"], 5)

    # classifier (no BN, no activation); output lane-padded to 128 cols
    y = jnp.dot(h.astype(jnp.bfloat16),
                w_ref[_W_OFF["cls"]:_W_OFF["cls"] + PAD, :],
                preferred_element_type=jnp.float32)
    out_ref[...] = y + b[6:7, :]


# ----------------------------------------------------------------------------
# Raw parameter construction (deterministic, synthetic — mirrors module shapes;
# BN stats are fresh-module eval stats: mean=0, var=1, gamma=1, beta=0).
# ----------------------------------------------------------------------------
def init_params(key):
    def linear(key, fan_in, fan_out):
        kw, kb = jax.random.split(key)
        w = jax.random.normal(kw, (fan_in, fan_out), jnp.float32) * 0.1
        b = jax.random.normal(kb, (fan_out,), jnp.float32) * 0.1
        return w, b

    keys = jax.random.split(key, 8)
    p = {}
    p["w1"], p["b1"] = linear(keys[0], 66, 32)
    p["w2"], p["b2"] = linear(keys[1], 32, 16)
    p["w3"], p["b3"] = linear(keys[2], 16, 8)
    for i, k in zip((1, 2, 3), (keys[3], keys[4], keys[5])):
        kl, kr = jax.random.split(k)
        p[f"wl{i}"], p[f"bl{i}"] = linear(kl, 8, 8)            # lin_l (bias)
        p[f"wr{i}"] = jax.random.normal(kr, (8, 8), jnp.float32) * 0.1  # lin_r
    p["wc"], p["bc"] = linear(keys[6], 8, 3)

    for name, c in (("1", 32), ("2", 16), ("3", 8),
                    ("c1", 8), ("c2", 8), ("c3", 8)):
        p[f"bn_gamma{name}"] = jnp.ones((c,), jnp.float32)
        p[f"bn_beta{name}"] = jnp.zeros((c,), jnp.float32)
        p[f"bn_mean{name}"] = jnp.zeros((c,), jnp.float32)
        p[f"bn_var{name}"] = jnp.ones((c,), jnp.float32)
    p["bn_eps"] = 1e-5
    return p


# ----------------------------------------------------------------------------
# One-time packing: fold eval-mode BN into weights/biases, zero-pad to the
# lane-dense 128-wide layout, and pack everything into two slabs.
# ----------------------------------------------------------------------------
def pack_params(p):
    eps = p["bn_eps"]

    def bn_scale_shift(tag):
        scale = p[f"bn_gamma{tag}"] / jnp.sqrt(p[f"bn_var{tag}"] + eps)
        shift = p[f"bn_beta{tag}"] - p[f"bn_mean{tag}"] * scale
        return scale, shift

    w_slab = jnp.zeros((W_ROWS, PAD), jnp.float32)
    b_slab = jnp.zeros((B_ROWS, PAD), jnp.float32)

    def put_w(slab, off, w):
        r, c = w.shape
        return slab.at[off:off + r, :c].set(w)

    # fc layers (fold BN: W' = W * scale, b' = b * scale + shift)
    for idx, (tag, wname, bname, key) in enumerate(
            (("1", "w1", "b1", "fc1"),
             ("2", "w2", "b2", "fc2"),
             ("3", "w3", "b3", "fc3"))):
        scale, shift = bn_scale_shift(tag)
        w_slab = put_w(w_slab, _W_OFF[key], p[wname] * scale[None, :])
        bf = p[bname] * scale + shift
        b_slab = b_slab.at[idx, :bf.shape[0]].set(bf)

    # SAGE layers: out = lin_l(agg) + bl + lin_r(x); BN folded into both mats.
    for i in (1, 2, 3):
        scale, shift = bn_scale_shift(f"c{i}")
        off = _W_OFF[f"sage{i}"]
        w_slab = put_w(w_slab, off, p[f"wl{i}"] * scale[None, :])        # agg
        w_slab = put_w(w_slab, off + PAD, p[f"wr{i}"] * scale[None, :])  # root
        bl = p[f"bl{i}"] * scale + shift
        b_slab = b_slab.at[2 + i, :bl.shape[0]].set(bl)

    # classifier (no BN)
    w_slab = put_w(w_slab, _W_OFF["cls"], p["wc"])
    b_slab = b_slab.at[6, :p["bc"].shape[0]].set(p["bc"])

    return w_slab.astype(jnp.bfloat16), b_slab


# ----------------------------------------------------------------------------
# Wrapper: glue (padded input slab, dense normalized adjacency) + pallas_call.
# ----------------------------------------------------------------------------
@functools.partial(jax.jit, static_argnames=("num_nodes",))
def lsp_conditional_gnn_forward(latent_features, edge_data, history,
                                is_subgoal, w_slab, b_slab, *, num_nodes):
    n = num_nodes
    n_pad = ((n + 15) // 16) * 16          # bf16 sublane multiple
    lf_w = latent_features.shape[1]        # 64

    # h = cat(latent_features, history[:,None], is_subgoal[:,None]) padded to
    # 128 lane-dense columns; assembled directly into the padded slab.
    h0 = jnp.zeros((n_pad, PAD), jnp.float32)
    h0 = h0.at[:n, :lf_w].set(latent_features.astype(jnp.float32))
    h0 = h0.at[:n, lf_w].set(history.astype(jnp.float32))
    h0 = h0.at[:n, lf_w + 1].set(is_subgoal.astype(jnp.float32))
    h0 = h0.astype(jnp.bfloat16)

    # Mirror the module's edge_index construction: both edge directions.
    e0, e1 = edge_data[0], edge_data[1]
    src = jnp.concatenate([e0, e1], axis=0)   # message source j
    dst = jnp.concatenate([e1, e0], axis=0)   # message target i

    # Dense row-normalized adjacency for scatter-mean aggregation (f32
    # normalization, cast to bf16 for the MXU; zero-in-degree rows -> 0).
    adj = jnp.zeros((n_pad, n_pad), jnp.float32).at[dst, src].add(1.0)
    deg = jnp.sum(adj, axis=1, keepdims=True)
    adj = (adj / jnp.maximum(deg, 1.0)).astype(jnp.bfloat16)

    vmem = pl.BlockSpec(memory_space=pltpu.MemorySpace.VMEM)
    out = pl.pallas_call(
        _gnn_forward_kernel,
        out_shape=jax.ShapeDtypeStruct((n_pad, PAD), jnp.float32),
        in_specs=[vmem] * 4,
        out_specs=vmem,
    )(h0, adj, w_slab, b_slab)
    return out[:n, :3]


if __name__ == "__main__":
    key = jax.random.PRNGKey(0)
    k_lf, k_e, k_h, k_s, k_p = jax.random.split(key, 5)

    N = 16          # number of graph nodes
    E = 24          # number of (directed) input edges

    latent_features = jax.random.normal(k_lf, (N, 64), jnp.float32)
    edge_data = jax.random.randint(k_e, (2, E), 0, N, jnp.int32)
    history = jax.random.bernoulli(k_h, 0.5, (N,)).astype(jnp.float32)
    is_subgoal = jax.random.bernoulli(k_s, 0.5, (N,)).astype(jnp.float32)

    w_slab, b_slab = pack_params(init_params(k_p))

    out = lsp_conditional_gnn_forward(
        latent_features, edge_data, history, is_subgoal,
        w_slab, b_slab, num_nodes=N)
    out = jax.block_until_ready(out)

    assert out.shape == (N, 3) and out.dtype == jnp.float32
    assert bool(jnp.all(jnp.isfinite(out)))
    print("KERNEL_OK")
</pallas_src>

<mosaic_0001>
module attributes {stable_mosaic.version = 11 : i64} {
  func.func private @main(%arg0: i32) attributes {dimension_semantics = [#tpu.dimension_semantics<core_parallel>], iteration_bounds = array<i64: 2>, tpu.core_type = #tpu.core_type<sc_scalar_subcore>, window_params = []} {
    return
  }
}

module attributes {stable_mosaic.version = 11 : i64} {
  func.func private @main(%arg0: i32) attributes {dimension_semantics = [#tpu.dimension_semantics<core_parallel>], iteration_bounds = array<i64: 2>, tpu.core_type = #tpu.core_type<sc_scalar_subcore>, window_params = []} {
    return
  }
}

module attributes {stable_mosaic.version = 11 : i64} {
  func.func @_gnn_forward_kernel(%arg0: memref<16x128xbf16, #tpu.memory_space<vmem>>, %arg1: memref<16x16xbf16, #tpu.memory_space<vmem>>, %arg2: memref<1280x128xbf16, #tpu.memory_space<vmem>>, %arg3: memref<8x128xf32, #tpu.memory_space<vmem>>, %arg4: memref<16x128xf32, #tpu.memory_space<vmem>>) attributes {dimension_semantics = [], scalar_prefetch = 0 : i64, scratch_operands = 0 : i64, tpu.core_type = #tpu.core_type<tc>} {
    %c0 = arith.constant 0 : index
    %c0_0 = arith.constant 0 : index
    %0 = vector.load %arg3[%c0, %c0_0] : memref<8x128xf32, #tpu.memory_space<vmem>>, vector<8x128xf32>
    %c0_1 = arith.constant 0 : index
    %c0_2 = arith.constant 0 : index
    %1 = vector.load %arg1[%c0_1, %c0_2] : memref<16x16xbf16, #tpu.memory_space<vmem>>, vector<16x16xbf16>
    %c0_3 = arith.constant 0 : index
    %c0_4 = arith.constant 0 : index
    %2 = vector.load %arg0[%c0_3, %c0_4] : memref<16x128xbf16, #tpu.memory_space<vmem>>, vector<16x128xbf16>
    %c0_5 = arith.constant 0 : index
    %c0_6 = arith.constant 0 : index
    %3 = vector.load %arg2[%c0_5, %c0_6] : memref<1280x128xbf16, #tpu.memory_space<vmem>>, vector<128x128xbf16>
    %cst = arith.constant dense<0.000000e+00> : vector<16x128xf32>
    %4 = tpu.matmul %2, %3, %cst {dimension_numbers = #tpu.dot_dimension_numbers<[1], [0], [0], [1], [0, 0, 1, 1], [], []>} : vector<16x128xbf16>, vector<128x128xbf16>, vector<16x128xf32> -> vector<16x128xf32>
    %5 = vector.extract_strided_slice %0 {offsets = [0, 0], sizes = [1, 128], strides = [1, 1]} : vector<8x128xf32> to vector<1x128xf32>
    %6 = vector.broadcast %5 : vector<1x128xf32> to vector<16x128xf32>
    %7 = arith.addf %4, %6 : vector<16x128xf32>
    %cst_7 = arith.constant 0.000000e+00 : f32
    %8 = vector.broadcast %cst_7 : f32 to vector<16x128xf32>
    %9 = arith.cmpf ogt, %7, %8 : vector<16x128xf32>
    %cst_8 = arith.constant 1.000000e-01 : f32
    %10 = vector.broadcast %cst_8 : f32 to vector<16x128xf32>
    %11 = arith.mulf %10, %7 : vector<16x128xf32>
    %12 = arith.select %9, %7, %11 : vector<16x128xi1>, vector<16x128xf32>
    %13 = arith.truncf %12 : vector<16x128xf32> to vector<16x128xbf16>
    %c128 = arith.constant 128 : index
    %c0_9 = arith.constant 0 : index
    %14 = vector.load %arg2[%c128, %c0_9] : memref<1280x128xbf16, #tpu.memory_space<vmem>>, vector<128x128xbf16>
    %cst_10 = arith.constant dense<0.000000e+00> : vector<16x128xf32>
    %15 = tpu.matmul %13, %14, %cst_10 {dimension_numbers = #tpu.dot_dimension_numbers<[1], [0], [0], [1], [0, 0, 1, 1], [], []>} : vector<16x128xbf16>, vector<128x128xbf16>, vector<16x128xf32> -> vector<16x128xf32>
    %16 = vector.extract_strided_slice %0 {offsets = [1, 0], sizes = [1, 128], strides = [1, 1]} : vector<8x128xf32> to vector<1x128xf32>
    %17 = vector.broadcast %16 : vector<1x128xf32> to vector<16x128xf32>
    %18 = arith.addf %15, %17 : vector<16x128xf32>
    %cst_11 = arith.constant 0.000000e+00 : f32
    %19 = vector.broadcast %cst_11 : f32 to vector<16x128xf32>
    %20 = arith.cmpf ogt, %18, %19 : vector<16x128xf32>
    %cst_12 = arith.constant 1.000000e-01 : f32
    %21 = vector.broadcast %cst_12 : f32 to vector<16x128xf32>
    %22 = arith.mulf %21, %18 : vector<16x128xf32>
    %23 = arith.select %20, %18, %22 : vector<16x128xi1>, vector<16x128xf32>
    %24 = arith.truncf %23 : vector<16x128xf32> to vector<16x128xbf16>
    %c256 = arith.constant 256 : index
    %c0_13 = arith.constant 0 : index
    %25 = vector.load %arg2[%c256, %c0_13] : memref<1280x128xbf16, #tpu.memory_space<vmem>>, vector<128x128xbf16>
    %cst_14 = arith.constant dense<0.000000e+00> : vector<16x128xf32>
    %26 = tpu.matmul %24, %25, %cst_14 {dimension_numbers = #tpu.dot_dimension_numbers<[1], [0], [0], [1], [0, 0, 1, 1], [], []>} : vector<16x128xbf16>, vector<128x128xbf16>, vector<16x128xf32> -> vector<16x128xf32>
    %27 = vector.extract_strided_slice %0 {offsets = [2, 0], sizes = [1, 128], strides = [1, 1]} : vector<8x128xf32> to vector<1x128xf32>
    %28 = vector.broadcast %27 : vector<1x128xf32> to vector<16x128xf32>
    %29 = arith.addf %26, %28 : vector<16x128xf32>
    %cst_15 = arith.constant 0.000000e+00 : f32
    %30 = vector.broadcast %cst_15 : f32 to vector<16x128xf32>
    %31 = arith.cmpf ogt, %29, %30 : vector<16x128xf32>
    %cst_16 = arith.constant 1.000000e-01 : f32
    %32 = vector.broadcast %cst_16 : f32 to vector<16x128xf32>
    %33 = arith.mulf %32, %29 : vector<16x128xf32>
    %34 = arith.select %31, %29, %33 : vector<16x128xi1>, vector<16x128xf32>
    %35 = arith.truncf %34 : vector<16x128xf32> to vector<16x128xbf16>
    %cst_17 = arith.constant dense<0.000000e+00> : vector<16x128xf32>
    %36 = tpu.matmul %1, %35, %cst_17 {dimension_numbers = #tpu.dot_dimension_numbers<[1], [0], [0], [1], [0, 0, 1, 1], [], []>} : vector<16x16xbf16>, vector<16x128xbf16>, vector<16x128xf32> -> vector<16x128xf32>
    %37 = arith.truncf %36 : vector<16x128xf32> to vector<16x128xbf16>
    %38 = tpu.concatenate %37, %35 in 1 : vector<16x128xbf16>, vector<16x128xbf16> -> vector<16x256xbf16>
    %c384 = arith.constant 384 : index
    %c0_18 = arith.constant 0 : index
    %39 = vector.load %arg2[%c384, %c0_18] : memref<1280x128xbf16, #tpu.memory_space<vmem>>, vector<256x128xbf16>
    %cst_19 = arith.constant dense<0.000000e+00> : vector<16x128xf32>
    %40 = tpu.matmul %38, %39, %cst_19 {dimension_numbers = #tpu.dot_dimension_numbers<[1], [0], [0], [1], [0, 0, 1, 1], [], []>} : vector<16x256xbf16>, vector<256x128xbf16>, vector<16x128xf32> -> vector<16x128xf32>
    %41 = vector.extract_strided_slice %0 {offsets = [3, 0], sizes = [1, 128], strides = [1, 1]} : vector<8x128xf32> to vector<1x128xf32>
    %42 = vector.broadcast %41 : vector<1x128xf32> to vector<16x128xf32>
    %43 = arith.addf %40, %42 : vector<16x128xf32>
    %cst_20 = arith.constant 0.000000e+00 : f32
    %44 = vector.broadcast %cst_20 : f32 to vector<16x128xf32>
    %45 = arith.cmpf ogt, %43, %44 : vector<16x128xf32>
    %cst_21 = arith.constant 1.000000e-01 : f32
    %46 = vector.broadcast %cst_21 : f32 to vector<16x128xf32>
    %47 = arith.mulf %46, %43 : vector<16x128xf32>
    %48 = arith.select %45, %43, %47 : vector<16x128xi1>, vector<16x128xf32>
    %49 = arith.truncf %48 : vector<16x128xf32> to vector<16x128xbf16>
    %cst_22 = arith.constant dense<0.000000e+00> : vector<16x128xf32>
    %50 = tpu.matmul %1, %49, %cst_22 {dimension_numbers = #tpu.dot_dimension_numbers<[1], [0], [0], [1], [0, 0, 1, 1], [], []>} : vector<16x16xbf16>, vector<16x128xbf16>, vector<16x128xf32> -> vector<16x128xf32>
    %51 = arith.truncf %50 : vector<16x128xf32> to vector<16x128xbf16>
    %52 = tpu.concatenate %51, %49 in 1 : vector<16x128xbf16>, vector<16x128xbf16> -> vector<16x256xbf16>
    %c640 = arith.constant 640 : index
    %c0_23 = arith.constant 0 : index
    %53 = vector.load %arg2[%c640, %c0_23] : memref<1280x128xbf16, #tpu.memory_space<vmem>>, vector<256x128xbf16>
    %cst_24 = arith.constant dense<0.000000e+00> : vector<16x128xf32>
    %54 = tpu.matmul %52, %53, %cst_24 {dimension_numbers = #tpu.dot_dimension_numbers<[1], [0], [0], [1], [0, 0, 1, 1], [], []>} : vector<16x256xbf16>, vector<256x128xbf16>, vector<16x128xf32> -> vector<16x128xf32>
    %55 = vector.extract_strided_slice %0 {offsets = [4, 0], sizes = [1, 128], strides = [1, 1]} : vector<8x128xf32> to vector<1x128xf32>
    %56 = vector.broadcast %55 : vector<1x128xf32> to vector<16x128xf32>
    %57 = arith.addf %54, %56 : vector<16x128xf32>
    %cst_25 = arith.constant 0.000000e+00 : f32
    %58 = vector.broadcast %cst_25 : f32 to vector<16x128xf32>
    %59 = arith.cmpf ogt, %57, %58 : vector<16x128xf32>
    %cst_26 = arith.constant 1.000000e-01 : f32
    %60 = vector.broadcast %cst_26 : f32 to vector<16x128xf32>
    %61 = arith.mulf %60, %57 : vector<16x128xf32>
    %62 = arith.select %59, %57, %61 : vector<16x128xi1>, vector<16x128xf32>
    %63 = arith.truncf %62 : vector<16x128xf32> to vector<16x128xbf16>
    %cst_27 = arith.constant dense<0.000000e+00> : vector<16x128xf32>
    %64 = tpu.matmul %1, %63, %cst_27 {dimension_numbers = #tpu.dot_dimension_numbers<[1], [0], [0], [1], [0, 0, 1, 1], [], []>} : vector<16x16xbf16>, vector<16x128xbf16>, vector<16x128xf32> -> vector<16x128xf32>
    %65 = arith.truncf %64 : vector<16x128xf32> to vector<16x128xbf16>
    %66 = tpu.concatenate %65, %63 in 1 : vector<16x128xbf16>, vector<16x128xbf16> -> vector<16x256xbf16>
    %c896 = arith.constant 896 : index
    %c0_28 = arith.constant 0 : index
    %67 = vector.load %arg2[%c896, %c0_28] : memref<1280x128xbf16, #tpu.memory_space<vmem>>, vector<256x128xbf16>
    %cst_29 = arith.constant dense<0.000000e+00> : vector<16x128xf32>
    %68 = tpu.matmul %66, %67, %cst_29 {dimension_numbers = #tpu.dot_dimension_numbers<[1], [0], [0], [1], [0, 0, 1, 1], [], []>} : vector<16x256xbf16>, vector<256x128xbf16>, vector<16x128xf32> -> vector<16x128xf32>
    %69 = vector.extract_strided_slice %0 {offsets = [5, 0], sizes = [1, 128], strides = [1, 1]} : vector<8x128xf32> to vector<1x128xf32>
    %70 = vector.broadcast %69 : vector<1x128xf32> to vector<16x128xf32>
    %71 = arith.addf %68, %70 : vector<16x128xf32>
    %cst_30 = arith.constant 0.000000e+00 : f32
    %72 = vector.broadcast %cst_30 : f32 to vector<16x128xf32>
    %73 = arith.cmpf ogt, %71, %72 : vector<16x128xf32>
    %cst_31 = arith.constant 1.000000e-01 : f32
    %74 = vector.broadcast %cst_31 : f32 to vector<16x128xf32>
    %75 = arith.mulf %74, %71 : vector<16x128xf32>
    %76 = arith.select %73, %71, %75 : vector<16x128xi1>, vector<16x128xf32>
    %77 = arith.truncf %76 : vector<16x128xf32> to vector<16x128xbf16>
    %c1152 = arith.constant 1152 : index
    %c0_32 = arith.constant 0 : index
    %78 = vector.load %arg2[%c1152, %c0_32] : memref<1280x128xbf16, #tpu.memory_space<vmem>>, vector<128x128xbf16>
    %cst_33 = arith.constant dense<0.000000e+00> : vector<16x128xf32>
    %79 = tpu.matmul %77, %78, %cst_33 {dimension_numbers = #tpu.dot_dimension_numbers<[1], [0], [0], [1], [0, 0, 1, 1], [], []>} : vector<16x128xbf16>, vector<128x128xbf16>, vector<16x128xf32> -> vector<16x128xf32>
    %80 = vector.extract_strided_slice %0 {offsets = [6, 0], sizes = [1, 128], strides = [1, 1]} : vector<8x128xf32> to vector<1x128xf32>
    %81 = vector.broadcast %80 : vector<1x128xf32> to vector<16x128xf32>
    %82 = arith.addf %79, %81 : vector<16x128xf32>
    %c0_34 = arith.constant 0 : index
    %c0_35 = arith.constant 0 : index
    %83 = vector.load %arg4[%c0_34, %c0_35] : memref<16x128xf32, #tpu.memory_space<vmem>>, vector<16x128xf32>
    tpu.vector_store %arg4[%c0_34, %c0_35], %82 {strides = array<i32>} : memref<16x128xf32, #tpu.memory_space<vmem>>, vector<16x128xf32>,
    return
  }
}

</mosaic_0001>

<llo_original>
// kernel: lsp_conditional_gnn_forward.1
$region0: #{lsp_conditional_gnn_forward.1}
  #allocation0 [shape = 'u32[]', space=smem, size = 0x4, offset = 0x4, fixed_abs, tag = 'smem constant byte address 0x4 - core index']
  #allocation1 [shape = 'u32[144,128]{1,0:T(1,128)}', space=vmem, size = 0x12000, scoped, tag = 'internal scratch']
  %s0 = inlined_call_operand.vmem [shape: bf16[16,128], index: 0, kind: input, shape index: {}]
  %s1 = inlined_call_operand.vmem [shape: bf16[16,16], index: 1, kind: input, shape index: {}]
  %s2 = inlined_call_operand.vmem [shape: bf16[1280,128], index: 2, kind: input, shape index: {}]
  %s3 = inlined_call_operand.vmem [shape: f32[8,128], index: 3, kind: input, shape index: {}]
  %s4 = inlined_call_operand.vmem [shape: f32[16,128], index: 4, kind: output, shape index: {}]
  %s5 = sld [smem:[#allocation0]]
  $region26: #{lsp_conditional_gnn_forward.1} parent=0
    _
  %s7 = ssub.s32 1, %s5
  %s8 = scalar_select 0, %s7, %s5
  // Predicated region
  $region2: #{lsp_conditional_gnn_forward.1} parent=0 // pred_check
    _
  $region3: #{lsp_conditional_gnn_forward.1} parent=0 // pred_check_branch
    %10 = sbr.rel (0) target = $region5
  $region4: #{lsp_conditional_gnn_forward.1} parent=0 // pred_region
    _
  $region5: #{lsp_conditional_gnn_forward.1} parent=0 // pred_fallthru
    _
  // Predicated region
  $region6: #{lsp_conditional_gnn_forward.1} parent=0 // pred_check
    _
  $region7: #{lsp_conditional_gnn_forward.1} parent=0 // pred_check_branch
    %12 = sbr.rel (0) target = $region9
  $region8: #{lsp_conditional_gnn_forward.1} parent=0 // pred_region
    _
  $region9: #{lsp_conditional_gnn_forward.1} parent=0 // pred_fallthru
    _
  // Predicated region
  $region10: #{lsp_conditional_gnn_forward.1} parent=0 // pred_check
    _
  $region11: #{lsp_conditional_gnn_forward.1} parent=0 // pred_check_branch
    %14 = sbr.rel (0) target = $region13
  $region12: #{lsp_conditional_gnn_forward.1} parent=0 // pred_region
    _
  $region13: #{lsp_conditional_gnn_forward.1} parent=0 // pred_fallthru
    _
  // Predicated region
  $region14: #{lsp_conditional_gnn_forward.1} parent=0 // pred_check
    _
  $region15: #{lsp_conditional_gnn_forward.1} parent=0 // pred_check_branch
    %16 = sbr.rel (0) target = $region17
  $region16: #{lsp_conditional_gnn_forward.1} parent=0 // pred_region
    _
  $region17: #{lsp_conditional_gnn_forward.1} parent=0 // pred_fallthru
    _
  %v18 = vld [vmem:[%s3] sm:$0xff]
  %v19 = vld [vmem:[%s1] sm:$0xf]
  %v20 = vld [vmem:[%s1 + $0x4] sm:$0xf]
  %v21 = vld [vmem:[%s0] sm:$0xf]
  %v22 = vld [vmem:[%s0 + $0x4] sm:$0xf]
  %v23 = vld [vmem:[%s2] sm:$0xf]
  %v24 = vld [vmem:[%s2 + $0x4] sm:$0xf]
  %v25 = vld [vmem:[%s2 + $0x8] sm:$0xf]
  %v26 = vld [vmem:[%s2 + $0xc] sm:$0xf]
  %v27 = vld [vmem:[%s2 + $0x10] sm:$0xf]
  %v28 = vld [vmem:[%s2 + $0x14] sm:$0xf]
  %v29 = vld [vmem:[%s2 + $0x18] sm:$0xf]
  %v30 = vld [vmem:[%s2 + $0x1c] sm:$0xf]
  %v31 = vld [vmem:[%s2 + $0x20] sm:$0xf]
  %v32 = vld [vmem:[%s2 + $0x24] sm:$0xf]
  %v33 = vld [vmem:[%s2 + $0x28] sm:$0xf]
  %v34 = vld [vmem:[%s2 + $0x2c] sm:$0xf]
  %v35 = vld [vmem:[%s2 + $0x30] sm:$0xf]
  %v36 = vld [vmem:[%s2 + $0x34] sm:$0xf]
  %v37 = vld [vmem:[%s2 + $0x38] sm:$0xf]
  %v38 = vld [vmem:[%s2 + $0x3c] sm:$0xf]
  %v39 = vlaneseq
  %v40 = vshrl.u32 %v39, 7
  %v41 = vsub.s32 0, %v40
  %v42 = vrot.slane %v18, %v41
  %v45 = vunpack.c.l.b16 %v21
  %v46 = vunpack.c.l.b16 %v22
  %v47 = vpack.c.b16 %v46, %v45
  %v65 = vunpack.c.l.b16 %v23
  %v66 = vunpack.c.l.b16 %v24
  %v67 = vunpack.c.l.b16 %v25
  %v68 = vunpack.c.l.b16 %v26
  %v69 = vunpack.c.l.b16 %v27
  %v70 = vunpack.c.l.b16 %v28
  %v71 = vunpack.c.l.b16 %v29
  %v72 = vunpack.c.l.b16 %v30
  %v73 = vunpack.c.l.b16 %v31
  %v74 = vunpack.c.l.b16 %v32
  %v75 = vunpack.c.l.b16 %v33
  %v76 = vunpack.c.l.b16 %v34
  %v77 = vunpack.c.l.b16 %v35
  %v78 = vunpack.c.l.b16 %v36
  %v79 = vunpack.c.l.b16 %v37
  %v80 = vunpack.c.l.b16 %v38
  %v81 = vpack.c.b16 %v66, %v65
  %v82 = vpack.c.b16 %v68, %v67
  %v83 = vpack.c.b16 %v70, %v69
  %v84 = vpack.c.b16 %v72, %v71
  %v85 = vpack.c.b16 %v74, %v73
  %v86 = vpack.c.b16 %v76, %v75
  %v87 = vpack.c.b16 %v78, %v77
  %v88 = vpack.c.b16 %v80, %v79
  %97 = vmatprep.subr.bf16.mxu0 0
  %98 = vmatpush1.bf16.msra.mxu0 %v81
  %99 = vmatprep.subr.bf16.mxu0 0
  %100 = vmatpush1.bf16.msra.mxu0 %v82
  %101 = vmatprep.subr.bf16.mxu0 0
  %102 = vmatpush1.bf16.msra.mxu0 %v83
  %103 = vmatprep.subr.bf16.mxu0 0
  %104 = vmatpush1.bf16.msra.mxu0 %v84
  %105 = vmatprep.subr.bf16.mxu0 0
  %106 = vmatpush1.bf16.msra.mxu0 %v85
  %107 = vmatprep.subr.bf16.mxu0 0
  %108 = vmatpush1.bf16.msra.mxu0 %v86
  %109 = vmatprep.subr.bf16.mxu0 0
  %110 = vmatpush1.bf16.msra.mxu0 %v87
  %111 = vmatprep.subr.bf16.mxu0 0
  %112 = vmatpush1.bf16.msra.mxu0 %v88
  %113 = vmatprep.subr.bf16.mxu0 0
  %114 = vmatpush1.bf16.msra.mxu0 0
  %115 = vmatprep.subr.bf16.mxu0 0
  %116 = vmatpush1.bf16.msra.mxu0 0
  %117 = vmatprep.subr.bf16.mxu0 0
  %118 = vmatpush1.bf16.msra.mxu0 0
  %119 = vmatprep.subr.bf16.mxu0 0
  %120 = vmatpush1.bf16.msra.mxu0 0
  %121 = vmatprep.subr.bf16.mxu0 0
  %122 = vmatpush1.bf16.msra.mxu0 0
  %123 = vmatprep.subr.bf16.mxu0 0
  %124 = vmatpush1.bf16.msra.mxu0 0
  %125 = vmatprep.subr.bf16.mxu0 0
  %126 = vmatpush1.bf16.msra.mxu0 0
  %127 = vmatprep.subr.bf16.mxu0 0
  %128 = vmatpush1.bf16.msra.mxu0 0
  %129 = vmatprep.mubr.bf16.mxu0 0
  %130 = vmatmul.mubr.bf16.gmra.mrb[0].mxu0 %v47
  %v131 = vpop.f32.mrb[0].mxu0
  %v132 = vadd.f32 %v42, %v131
  %v133 = vpop.f32.mrb[0].mxu0
  %v134 = vpop.f32.mrb[0].mxu0
  %v135 = vadd.f32 %v42, %v134
  %v136 = vpop.f32.mrb[0].mxu0
  %137 = vdwg.mxu0
  %vm138 = vcmp.gt.f32.partialorder %v132, 0.0
  %vm139 = vcmp.gt.f32.partialorder %v135, 0.0
  %v140 = vmul.f32 %v132, 0.1
  %v141 = vmul.f32 %v135, 0.1
  %v142 = vsel %vm138, %v132, %v140
  %v143 = vsel %vm139, %v135, %v141
  %v144 = vpack.c.bf16 %v143, %v142
  %v145 = vld [vmem:[%s2 + $0x40] sm:$0xf]
  %v146 = vld [vmem:[%s2 + $0x44] sm:$0xf]
  %v147 = vld [vmem:[%s2 + $0x48] sm:$0xf]
  %v148 = vld [vmem:[%s2 + $0x4c] sm:$0xf]
  %v149 = vld [vmem:[%s2 + $0x50] sm:$0xf]
  %v150 = vld [vmem:[%s2 + $0x54] sm:$0xf]
  %v151 = vld [vmem:[%s2 + $0x58] sm:$0xf]
  %v152 = vld [vmem:[%s2 + $0x5c] sm:$0xf]
  %v153 = vld [vmem:[%s2 + $0x60] sm:$0xf]
  %v154 = vld [vmem:[%s2 + $0x64] sm:$0xf]
  %v155 = vld [vmem:[%s2 + $0x68] sm:$0xf]
  %v156 = vld [vmem:[%s2 + $0x6c] sm:$0xf]
  %v157 = vld [vmem:[%s2 + $0x70] sm:$0xf]
  %v158 = vld [vmem:[%s2 + $0x74] sm:$0xf]
  %v159 = vld [vmem:[%s2 + $0x78] sm:$0xf]
  %v160 = vld [vmem:[%s2 + $0x7c] sm:$0xf]
  %v161 = vlaneseq
  %v162 = vshrl.u32 %v161, 7
  %v163 = vsub.s32 1, %v162
  %v164 = vrot.slane %v18, %v163
  %v181 = vunpack.c.l.b16 %v145
  %v182 = vunpack.c.l.b16 %v146
  %v183 = vunpack.c.l.b16 %v147
  %v184 = vunpack.c.l.b16 %v148
  %v185 = vunpack.c.l.b16 %v149
  %v186 = vunpack.c.l.b16 %v150
  %v187 = vunpack.c.l.b16 %v151
  %v188 = vunpack.c.l.b16 %v152
  %v189 = vunpack.c.l.b16 %v153
  %v190 = vunpack.c.l.b16 %v154
  %v191 = vunpack.c.l.b16 %v155
  %v192 = vunpack.c.l.b16 %v156
  %v193 = vunpack.c.l.b16 %v157
  %v194 = vunpack.c.l.b16 %v158
  %v195 = vunpack.c.l.b16 %v159
  %v196 = vunpack.c.l.b16 %v160
  %v197 = vpack.c.b16 %v182, %v181
  %v198 = vpack.c.b16 %v184, %v183
  %v199 = vpack.c.b16 %v186, %v185
  %v200 = vpack.c.b16 %v188, %v187
  %v201 = vpack.c.b16 %v190, %v189
  %v202 = vpack.c.b16 %v192, %v191
  %v203 = vpack.c.b16 %v194, %v193
  %v204 = vpack.c.b16 %v196, %v195
  %213 = vmatprep.subr.bf16.mxu0 0
  %214 = vmatpush1.bf16.msra.mxu0 %v197
  %215 = vmatprep.subr.bf16.mxu0 0
  %216 = vmatpush1.bf16.msra.mxu0 %v198
  %217 = vmatprep.subr.bf16.mxu0 0
  %218 = vmatpush1.bf16.msra.mxu0 %v199
  %219 = vmatprep.subr.bf16.mxu0 0
  %220 = vmatpush1.bf16.msra.mxu0 %v200
  %221 = vmatprep.subr.bf16.mxu0 0
  %222 = vmatpush1.bf16.msra.mxu0 %v201
  %223 = vmatprep.subr.bf16.mxu0 0
  %224 = vmatpush1.bf16.msra.mxu0 %v202
  %225 = vmatprep.subr.bf16.mxu0 0
  %226 = vmatpush1.bf16.msra.mxu0 %v203
  %227 = vmatprep.subr.bf16.mxu0 0
  %228 = vmatpush1.bf16.msra.mxu0 %v204
  %229 = vmatprep.subr.bf16.mxu0 0
  %230 = vmatpush1.bf16.msra.mxu0 0
  %231 = vmatprep.subr.bf16.mxu0 0
  %232 = vmatpush1.bf16.msra.mxu0 0
  %233 = vmatprep.subr.bf16.mxu0 0
  %234 = vmatpush1.bf16.msra.mxu0 0
  %235 = vmatprep.subr.bf16.mxu0 0
  %236 = vmatpush1.bf16.msra.mxu0 0
  %237 = vmatprep.subr.bf16.mxu0 0
  %238 = vmatpush1.bf16.msra.mxu0 0
  %239 = vmatprep.subr.bf16.mxu0 0
  %240 = vmatpush1.bf16.msra.mxu0 0
  %241 = vmatprep.subr.bf16.mxu0 0
  %242 = vmatpush1.bf16.msra.mxu0 0
  %243 = vmatprep.subr.bf16.mxu0 0
  %244 = vmatpush1.bf16.msra.mxu0 0
  %245 = vmatprep.mubr.bf16.mxu0 0
  %246 = vmatmul.mubr.bf16.gmra.mrb[0].mxu0 %v144
  %v247 = vpop.f32.mrb[0].mxu0
  %v248 = vadd.f32 %v164, %v247
  %v249 = vpop.f32.mrb[0].mxu0
  %v250 = vpop.f32.mrb[0].mxu0
  %v251 = vadd.f32 %v164, %v250
  %v252 = vpop.f32.mrb[0].mxu0
  %253 = vdwg.mxu0
  %vm254 = vcmp.gt.f32.partialorder %v248, 0.0
  %vm255 = vcmp.gt.f32.partialorder %v251, 0.0
  %v256 = vmul.f32 %v248, 0.1
  %v257 = vmul.f32 %v251, 0.1
  %v258 = vsel %vm254, %v248, %v256
  %v259 = vsel %vm255, %v251, %v257
  %v260 = vpack.c.bf16 %v259, %v258
  %v261 = vld [vmem:[%s2 + $0x80] sm:$0xf]
  %v262 = vld [vmem:[%s2 + $0x84] sm:$0xf]
  %v263 = vld [vmem:[%s2 + $0x88] sm:$0xf]
  %v264 = vld [vmem:[%s2 + $0x8c] sm:$0xf]
  %v265 = vld [vmem:[%s2 + $0x90] sm:$0xf]
  %v266 = vld [vmem:[%s2 + $0x94] sm:$0xf]
  %v267 = vld [vmem:[%s2 + $0x98] sm:$0xf]
  %v268 = vld [vmem:[%s2 + $0x9c] sm:$0xf]
  %v269 = vld [vmem:[%s2 + $0xa0] sm:$0xf]
  %v270 = vld [vmem:[%s2 + $0xa4] sm:$0xf]
  %v271 = vld [vmem:[%s2 + $0xa8] sm:$0xf]
  %v272 = vld [vmem:[%s2 + $0xac] sm:$0xf]
  %v273 = vld [vmem:[%s2 + $0xb0] sm:$0xf]
  %v274 = vld [vmem:[%s2 + $0xb4] sm:$0xf]
  %v275 = vld [vmem:[%s2 + $0xb8] sm:$0xf]
  %v276 = vld [vmem:[%s2 + $0xbc] sm:$0xf]
  %v277 = vlaneseq
  %v278 = vshrl.u32 %v277, 7
  %v279 = vsub.s32 2, %v278
  %v280 = vrot.slane %v18, %v279
  %v297 = vunpack.c.l.b16 %v261
  %v298 = vunpack.c.l.b16 %v262
  %v299 = vunpack.c.l.b16 %v263
  %v300 = vunpack.c.l.b16 %v264
  %v301 = vunpack.c.l.b16 %v265
  %v302 = vunpack.c.l.b16 %v266
  %v303 = vunpack.c.l.b16 %v267
  %v304 = vunpack.c.l.b16 %v268
  %v305 = vunpack.c.l.b16 %v269
  %v306 = vunpack.c.l.b16 %v270
  %v307 = vunpack.c.l.b16 %v271
  %v308 = vunpack.c.l.b16 %v272
  %v309 = vunpack.c.l.b16 %v273
  %v310 = vunpack.c.l.b16 %v274
  %v311 = vunpack.c.l.b16 %v275
  %v312 = vunpack.c.l.b16 %v276
  %v313 = vpack.c.b16 %v298, %v297
  %v314 = vpack.c.b16 %v300, %v299
  %v315 = vpack.c.b16 %v302, %v301
  %v316 = vpack.c.b16 %v304, %v303
  %v317 = vpack.c.b16 %v306, %v305
  %v318 = vpack.c.b16 %v308, %v307
  %v319 = vpack.c.b16 %v310, %v309
  %v320 = vpack.c.b16 %v312, %v311
  %329 = vmatprep.subr.bf16.mxu0 0
  %330 = vmatpush1.bf16.msra.mxu0 %v313
  %331 = vmatprep.subr.bf16.mxu0 0
  %332 = vmatpush1.bf16.msra.mxu0 %v314
  %333 = vmatprep.subr.bf16.mxu0 0
  %334 = vmatpush1.bf16.msra.mxu0 %v315
  %335 = vmatprep.subr.bf16.mxu0 0
  %336 = vmatpush1.bf16.msra.mxu0 %v316
  %337 = vmatprep.subr.bf16.mxu0 0
  %338 = vmatpush1.bf16.msra.mxu0 %v317
  %339 = vmatprep.subr.bf16.mxu0 0
  %340 = vmatpush1.bf16.msra.mxu0 %v318
  %341 = vmatprep.subr.bf16.mxu0 0
  %342 = vmatpush1.bf16.msra.mxu0 %v319
  %343 = vmatprep.subr.bf16.mxu0 0
  %344 = vmatpush1.bf16.msra.mxu0 %v320
  %345 = vmatprep.subr.bf16.mxu0 0
  %346 = vmatpush1.bf16.msra.mxu0 0
  %347 = vmatprep.subr.bf16.mxu0 0
  %348 = vmatpush1.bf16.msra.mxu0 0
  %349 = vmatprep.subr.bf16.mxu0 0
  %350 = vmatpush1.bf16.msra.mxu0 0
  %351 = vmatprep.subr.bf16.mxu0 0
  %352 = vmatpush1.bf16.msra.mxu0 0
  %353 = vmatprep.subr.bf16.mxu0 0
  %354 = vmatpush1.bf16.msra.mxu0 0
  %355 = vmatprep.subr.bf16.mxu0 0
  %356 = vmatpush1.bf16.msra.mxu0 0
  %357 = vmatprep.subr.bf16.mxu0 0
  %358 = vmatpush1.bf16.msra.mxu0 0
  %359 = vmatprep.subr.bf16.mxu0 0
  %360 = vmatpush1.bf16.msra.mxu0 0
  %361 = vmatprep.mubr.bf16.mxu0 0
  %362 = vmatmul.mubr.bf16.gmra.mrb[0].mxu0 %v260
  %v363 = vpop.f32.mrb[0].mxu0
  %v364 = vadd.f32 %v280, %v363
  %v365 = vpop.f32.mrb[0].mxu0
  %v366 = vpop.f32.mrb[0].mxu0
  %v367 = vadd.f32 %v280, %v366
  %v368 = vpop.f32.mrb[0].mxu0
  %369 = vdwg.mxu0
  %vm370 = vcmp.gt.f32.partialorder %v364, 0.0
  %vm371 = vcmp.gt.f32.partialorder %v367, 0.0
  %v372 = vmul.f32 %v364, 0.1
  %v373 = vmul.f32 %v367, 0.1
  %v374 = vsel %vm370, %v364, %v372
  %v375 = vsel %vm371, %v367, %v373
  %v376 = vpack.c.bf16 %v375, %v374
  %v379 = vunpack.c.l.b16 %v19
  %v380 = vunpack.c.l.b16 %v20
  %v381 = vpack.c.b16 %v380, %v379
  %vm382 = vcmask 130048
  %v384 = vsel %vm382, %v381, 0
  %386 = vmatprep.subr.bf16.mxu0 0
  %387 = vmatpush1.bf16.msra.mxu0 %v376
  %388 = vmatprep.subr.bf16.mxu0 0
  %389 = vmatpush1.bf16.msra.mxu0 0
  %390 = vmatprep.subr.bf16.mxu0 0
  %391 = vmatpush1.bf16.msra.mxu0 0
  %392 = vmatprep.subr.bf16.mxu0 0
  %393 = vmatpush1.bf16.msra.mxu0 0
  %394 = vmatprep.subr.bf16.mxu0 0
  %395 = vmatpush1.bf16.msra.mxu0 0
  %396 = vmatprep.subr.bf16.mxu0 0
  %397 = vmatpush1.bf16.msra.mxu0 0
  %398 = vmatprep.subr.bf16.mxu0 0
  %399 = vmatpush1.bf16.msra.mxu0 0
  %400 = vmatprep.subr.bf16.mxu0 0
  %401 = vmatpush1.bf16.msra.mxu0 0
  %402 = vmatprep.subr.bf16.mxu0 0
  %403 = vmatpush1.bf16.msra.mxu0 0
  %404 = vmatprep.subr.bf16.mxu0 0
  %405 = vmatpush1.bf16.msra.mxu0 0
  %406 = vmatprep.subr.bf16.mxu0 0
  %407 = vmatpush1.bf16.msra.mxu0 0
  %408 = vmatprep.subr.bf16.mxu0 0
  %409 = vmatpush1.bf16.msra.mxu0 0
  %410 = vmatprep.subr.bf16.mxu0 0
  %411 = vmatpush1.bf16.msra.mxu0 0
  %412 = vmatprep.subr.bf16.mxu0 0
  %413 = vmatpush1.bf16.msra.mxu0 0
  %414 = vmatprep.subr.bf16.mxu0 0
  %415 = vmatpush1.bf16.msra.mxu0 0
  %416 = vmatprep.subr.bf16.mxu0 0
  %417 = vmatpush1.bf16.msra.mxu0 0
  %418 = vmatprep.mubr.bf16.mxu0 0
  %419 = vmatmul.mubr.bf16.gmra.mrb[0].mxu0 %v384
  %v420 = vpop.f32.mrb[0].mxu0
  %v421 = vadd.f32 0.0, %v420
  %v422 = vpop.f32.mrb[0].mxu0
  %v423 = vpop.f32.mrb[0].mxu0
  %v424 = vadd.f32 0.0, %v423
  %v425 = vpop.f32.mrb[0].mxu0
  %426 = vdwg.mxu0
  %v427 = vpack.c.bf16 %v424, %v421
  %v428 = vld [vmem:[%s2 + $0xc0] sm:$0xf]
  %v429 = vld [vmem:[%s2 + $0xc4] sm:$0xf]
  %v430 = vld [vmem:[%s2 + $0xc8] sm:$0xf]
  %v431 = vld [vmem:[%s2 + $0xcc] sm:$0xf]
  %v432 = vld [vmem:[%s2 + $0xd0] sm:$0xf]
  %v433 = vld [vmem:[%s2 + $0xd4] sm:$0xf]
  %v434 = vld [vmem:[%s2 + $0xd8] sm:$0xf]
  %v435 = vld [vmem:[%s2 + $0xdc] sm:$0xf]
  %v436 = vld [vmem:[%s2 + $0xe0] sm:$0xf]
  %v437 = vld [vmem:[%s2 + $0xe4] sm:$0xf]
  %v438 = vld [vmem:[%s2 + $0xe8] sm:$0xf]
  %v439 = vld [vmem:[%s2 + $0xec] sm:$0xf]
  %v440 = vld [vmem:[%s2 + $0xf0] sm:$0xf]
  %v441 = vld [vmem:[%s2 + $0xf4] sm:$0xf]
  %v442 = vld [vmem:[%s2 + $0xf8] sm:$0xf]
  %v443 = vld [vmem:[%s2 + $0xfc] sm:$0xf]
  %v444 = vld [vmem:[%s2 + $0x100] sm:$0xf]
  %v445 = vld [vmem:[%s2 + $0x104] sm:$0xf]
  %v446 = vld [vmem:[%s2 + $0x108] sm:$0xf]
  %v447 = vld [vmem:[%s2 + $0x10c] sm:$0xf]
  %v448 = vld [vmem:[%s2 + $0x110] sm:$0xf]
  %v449 = vld [vmem:[%s2 + $0x114] sm:$0xf]
  %v450 = vld [vmem:[%s2 + $0x118] sm:$0xf]
  %v451 = vld [vmem:[%s2 + $0x11c] sm:$0xf]
  %v452 = vld [vmem:[%s2 + $0x120] sm:$0xf]
  %v453 = vld [vmem:[%s2 + $0x124] sm:$0xf]
  %v454 = vld [vmem:[%s2 + $0x128] sm:$0xf]
  %v455 = vld [vmem:[%s2 + $0x12c] sm:$0xf]
  %v456 = vld [vmem:[%s2 + $0x130] sm:$0xf]
  %v457 = vld [vmem:[%s2 + $0x134] sm:$0xf]
  %v458 = vld [vmem:[%s2 + $0x138] sm:$0xf]
  %v459 = vld [vmem:[%s2 + $0x13c] sm:$0xf]
  %v460 = vlaneseq
  %v461 = vshrl.u32 %v460, 7
  %v462 = vsub.s32 3, %v461
  %v463 = vrot.slane %v18, %v462
  %v496 = vunpack.c.l.b16 %v428
  %v497 = vunpack.c.l.b16 %v429
  %v498 = vunpack.c.l.b16 %v430
  %v499 = vunpack.c.l.b16 %v431
  %v500 = vunpack.c.l.b16 %v432
  %v501 = vunpack.c.l.b16 %v433
  %v502 = vunpack.c.l.b16 %v434
  %v503 = vunpack.c.l.b16 %v435
  %v504 = vunpack.c.l.b16 %v436
  %v505 = vunpack.c.l.b16 %v437
  %v506 = vunpack.c.l.b16 %v438
  %v507 = vunpack.c.l.b16 %v439
  %v508 = vunpack.c.l.b16 %v440
  %v509 = vunpack.c.l.b16 %v441
  %v510 = vunpack.c.l.b16 %v442
  %v511 = vunpack.c.l.b16 %v443
  %v512 = vunpack.c.l.b16 %v444
  %v513 = vunpack.c.l.b16 %v445
  %v514 = vunpack.c.l.b16 %v446
  %v515 = vunpack.c.l.b16 %v447
  %v516 = vunpack.c.l.b16 %v448
  %v517 = vunpack.c.l.b16 %v449
  %v518 = vunpack.c.l.b16 %v450
  %v519 = vunpack.c.l.b16 %v451
  %v520 = vunpack.c.l.b16 %v452
  %v521 = vunpack.c.l.b16 %v453
  %v522 = vunpack.c.l.b16 %v454
  %v523 = vunpack.c.l.b16 %v455
  %v524 = vunpack.c.l.b16 %v456
  %v525 = vunpack.c.l.b16 %v457
  %v526 = vunpack.c.l.b16 %v458
  %v527 = vunpack.c.l.b16 %v459
  %v528 = vpack.c.b16 %v497, %v496
  %v529 = vpack.c.b16 %v499, %v498
  %v530 = vpack.c.b16 %v501, %v500
  %v531 = vpack.c.b16 %v503, %v502
  %v532 = vpack.c.b16 %v505, %v504
  %v533 = vpack.c.b16 %v507, %v506
  %v534 = vpack.c.b16 %v509, %v508
  %v535 = vpack.c.b16 %v511, %v510
  %v536 = vpack.c.b16 %v513, %v512
  %v537 = vpack.c.b16 %v515, %v514
  %v538 = vpack.c.b16 %v517, %v516
  %v539 = vpack.c.b16 %v519, %v518
  %v540 = vpack.c.b16 %v521, %v520
  %v541 = vpack.c.b16 %v523, %v522
  %v542 = vpack.c.b16 %v525, %v524
  %v543 = vpack.c.b16 %v527, %v526
  %560 = vmatprep.subr.bf16.mxu0 0
  %561 = vmatpush1.bf16.msra.mxu0 %v528
  %562 = vmatprep.subr.bf16.mxu0 0
  %563 = vmatpush1.bf16.msra.mxu0 %v529
  %564 = vmatprep.subr.bf16.mxu0 0
  %565 = vmatpush1.bf16.msra.mxu0 %v530
  %566 = vmatprep.subr.bf16.mxu0 0
  %567 = vmatpush1.bf16.msra.mxu0 %v531
  %568 = vmatprep.subr.bf16.mxu0 0
  %569 = vmatpush1.bf16.msra.mxu0 %v532
  %570 = vmatprep.subr.bf16.mxu0 0
  %571 = vmatpush1.bf16.msra.mxu0 %v533
  %572 = vmatprep.subr.bf16.mxu0 0
  %573 = vmatpush1.bf16.msra.mxu0 %v534
  %574 = vmatprep.subr.bf16.mxu0 0
  %575 = vmatpush1.bf16.msra.mxu0 %v535
  %576 = vmatprep.subr.bf16.mxu0 0
  %577 = vmatpush1.bf16.msra.mxu0 %v536
  %578 = vmatprep.subr.bf16.mxu0 0
  %579 = vmatpush1.bf16.msra.mxu0 %v537
  %580 = vmatprep.subr.bf16.mxu0 0
  %581 = vmatpush1.bf16.msra.mxu0 %v538
  %582 = vmatprep.subr.bf16.mxu0 0
  %583 = vmatpush1.bf16.msra.mxu0 %v539
  %584 = vmatprep.subr.bf16.mxu0 0
  %585 = vmatpush1.bf16.msra.mxu0 %v540
  %586 = vmatprep.subr.bf16.mxu0 0
  %587 = vmatpush1.bf16.msra.mxu0 %v541
  %588 = vmatprep.subr.bf16.mxu0 0
  %589 = vmatpush1.bf16.msra.mxu0 %v542
  %590 = vmatprep.subr.bf16.mxu0 0
  %591 = vmatpush1.bf16.msra.mxu0 %v543
  %592 = vmatprep.mubr.bf16.mxu0 %v376
  %593 = vmatmul.mubr.bf16.gmra.mrb[0].mxu0 %v427
  %v594 = vpop.f32.mrb[0].mxu0
  %v595 = vadd.f32 %v463, %v594
  %v596 = vpop.f32.mrb[0].mxu0
  %v597 = vpop.f32.mrb[0].mxu0
  %v598 = vadd.f32 %v463, %v597
  %v599 = vpop.f32.mrb[0].mxu0
  %600 = vdwg.mxu0
  %vm601 = vcmp.gt.f32.partialorder %v595, 0.0
  %vm602 = vcmp.gt.f32.partialorder %v598, 0.0
  %v603 = vmul.f32 %v595, 0.1
  %v604 = vmul.f32 %v598, 0.1
  %v605 = vsel %vm601, %v595, %v603
  %v606 = vsel %vm602, %v598, %v604
  %v607 = vpack.c.bf16 %v606, %v605
  %608 = vmatprep.subr.bf16.mxu0 0
  %609 = vmatpush1.bf16.msra.mxu0 %v607
  %610 = vmatprep.subr.bf16.mxu0 0
  %611 = vmatpush1.bf16.msra.mxu0 0
  %612 = vmatprep.subr.bf16.mxu0 0
  %613 = vmatpush1.bf16.msra.mxu0 0
  %614 = vmatprep.subr.bf16.mxu0 0
  %615 = vmatpush1.bf16.msra.mxu0 0
  %616 = vmatprep.subr.bf16.mxu0 0
  %617 = vmatpush1.bf16.msra.mxu0 0
  %618 = vmatprep.subr.bf16.mxu0 0
  %619 = vmatpush1.bf16.msra.mxu0 0
  %620 = vmatprep.subr.bf16.mxu0 0
  %621 = vmatpush1.bf16.msra.mxu0 0
  %622 = vmatprep.subr.bf16.mxu0 0
  %623 = vmatpush1.bf16.msra.mxu0 0
  %624 = vmatprep.subr.bf16.mxu0 0
  %625 = vmatpush1.bf16.msra.mxu0 0
  %626 = vmatprep.subr.bf16.mxu0 0
  %627 = vmatpush1.bf16.msra.mxu0 0
  %628 = vmatprep.subr.bf16.mxu0 0
  %629 = vmatpush1.bf16.msra.mxu0 0
  %630 = vmatprep.subr.bf16.mxu0 0
  %631 = vmatpush1.bf16.msra.mxu0 0
  %632 = vmatprep.subr.bf16.mxu0 0
  %633 = vmatpush1.bf16.msra.mxu0 0
  %634 = vmatprep.subr.bf16.mxu0 0
  %635 = vmatpush1.bf16.msra.mxu0 0
  %636 = vmatprep.subr.bf16.mxu0 0
  %637 = vmatpush1.bf16.msra.mxu0 0
  %638 = vmatprep.subr.bf16.mxu0 0
  %639 = vmatpush1.bf16.msra.mxu0 0
  %640 = vmatprep.mubr.bf16.mxu0 0
  %641 = vmatmul.mubr.bf16.gmra.mrb[0].mxu0 %v384
  %v642 = vpop.f32.mrb[0].mxu0
  %v643 = vadd.f32 0.0, %v642
  %v644 = vpop.f32.mrb[0].mxu0
  %v645 = vpop.f32.mrb[0].mxu0
  %v646 = vadd.f32 0.0, %v645
  %v647 = vpop.f32.mrb[0].mxu0
  %648 = vdwg.mxu0
  %v649 = vpack.c.bf16 %v646, %v643
  %v650 = vld [vmem:[%s2 + $0x140] sm:$0xf]
  %v651 = vld [vmem:[%s2 + $0x144] sm:$0xf]
  %v652 = vld [vmem:[%s2 + $0x148] sm:$0xf]
  %v653 = vld [vmem:[%s2 + $0x14c] sm:$0xf]
  %v654 = vld [vmem:[%s2 + $0x150] sm:$0xf]
  %v655 = vld [vmem:[%s2 + $0x154] sm:$0xf]
  %v656 = vld [vmem:[%s2 + $0x158] sm:$0xf]
  %v657 = vld [vmem:[%s2 + $0x15c] sm:$0xf]
  %v658 = vld [vmem:[%s2 + $0x160] sm:$0xf]
  %v659 = vld [vmem:[%s2 + $0x164] sm:$0xf]
  %v660 = vld [vmem:[%s2 + $0x168] sm:$0xf]
  %v661 = vld [vmem:[%s2 + $0x16c] sm:$0xf]
  %v662 = vld [vmem:[%s2 + $0x170] sm:$0xf]
  %v663 = vld [vmem:[%s2 + $0x174] sm:$0xf]
  %v664 = vld [vmem:[%s2 + $0x178] sm:$0xf]
  %v665 = vld [vmem:[%s2 + $0x17c] sm:$0xf]
  %v666 = vld [vmem:[%s2 + $0x180] sm:$0xf]
  %v667 = vld [vmem:[%s2 + $0x184] sm:$0xf]
  %v668 = vld [vmem:[%s2 + $0x188] sm:$0xf]
  %v669 = vld [vmem:[%s2 + $0x18c] sm:$0xf]
  %v670 = vld [vmem:[%s2 + $0x190] sm:$0xf]
  %v671 = vld [vmem:[%s2 + $0x194] sm:$0xf]
  %v672 = vld [vmem:[%s2 + $0x198] sm:$0xf]
  %v673 = vld [vmem:[%s2 + $0x19c] sm:$0xf]
  %v674 = vld [vmem:[%s2 + $0x1a0] sm:$0xf]
  %v675 = vld [vmem:[%s2 + $0x1a4] sm:$0xf]
  %v676 = vld [vmem:[%s2 + $0x1a8] sm:$0xf]
  %v677 = vld [vmem:[%s2 + $0x1ac] sm:$0xf]
  %v678 = vld [vmem:[%s2 + $0x1b0] sm:$0xf]
  %v679 = vld [vmem:[%s2 + $0x1b4] sm:$0xf]
  %v680 = vld [vmem:[%s2 + $0x1b8] sm:$0xf]
  %v681 = vld [vmem:[%s2 + $0x1bc] sm:$0xf]
  %v682 = vlaneseq
  %v683 = vshrl.u32 %v682, 7
  %v684 = vsub.s32 4, %v683
  %v685 = vrot.slane %v18, %v684
  %v718 = vunpack.c.l.b16 %v650
  %v719 = vunpack.c.l.b16 %v651
  %v720 = vunpack.c.l.b16 %v652
  %v721 = vunpack.c.l.b16 %v653
  %v722 = vunpack.c.l.b16 %v654
  %v723 = vunpack.c.l.b16 %v655
  %v724 = vunpack.c.l.b16 %v656
  %v725 = vunpack.c.l.b16 %v657
  %v726 = vunpack.c.l.b16 %v658
  %v727 = vunpack.c.l.b16 %v659
  %v728 = vunpack.c.l.b16 %v660
  %v729 = vunpack.c.l.b16 %v661
  %v730 = vunpack.c.l.b16 %v662
  %v731 = vunpack.c.l.b16 %v663
  %v732 = vunpack.c.l.b16 %v664
  %v733 = vunpack.c.l.b16 %v665
  %v734 = vunpack.c.l.b16 %v666
  %v735 = vunpack.c.l.b16 %v667
  %v736 = vunpack.c.l.b16 %v668
  %v737 = vunpack.c.l.b16 %v669
  %v738 = vunpack.c.l.b16 %v670
  %v739 = vunpack.c.l.b16 %v671
  %v740 = vunpack.c.l.b16 %v672
  %v741 = vunpack.c.l.b16 %v673
  %v742 = vunpack.c.l.b16 %v674
  %v743 = vunpack.c.l.b16 %v675
  %v744 = vunpack.c.l.b16 %v676
  %v745 = vunpack.c.l.b16 %v677
  %v746 = vunpack.c.l.b16 %v678
  %v747 = vunpack.c.l.b16 %v679
  %v748 = vunpack.c.l.b16 %v680
  %v749 = vunpack.c.l.b16 %v681
  %v750 = vpack.c.b16 %v719, %v718
  %v751 = vpack.c.b16 %v721, %v720
  %v752 = vpack.c.b16 %v723, %v722
  %v753 = vpack.c.b16 %v725, %v724
  %v754 = vpack.c.b16 %v727, %v726
  %v755 = vpack.c.b16 %v729, %v728
  %v756 = vpack.c.b16 %v731, %v730
  %v757 = vpack.c.b16 %v733, %v732
  %v758 = vpack.c.b16 %v735, %v734
  %v759 = vpack.c.b16 %v737, %v736
  %v760 = vpack.c.b16 %v739, %v738
  %v761 = vpack.c.b16 %v741, %v740
  %v762 = vpack.c.b16 %v743, %v742
  %v763 = vpack.c.b16 %v745, %v744
  %v764 = vpack.c.b16 %v747, %v746
  %v765 = vpack.c.b16 %v749, %v748
  %782 = vmatprep.subr.bf16.mxu0 0
  %783 = vmatpush1.bf16.msra.mxu0 %v750
  %784 = vmatprep.subr.bf16.mxu0 0
  %785 = vmatpush1.bf16.msra.mxu0 %v751
  %786 = vmatprep.subr.bf16.mxu0 0
  %787 = vmatpush1.bf16.msra.mxu0 %v752
  %788 = vmatprep.subr.bf16.mxu0 0
  %789 = vmatpush1.bf16.msra.mxu0 %v753
  %790 = vmatprep.subr.bf16.mxu0 0
  %791 = vmatpush1.bf16.msra.mxu0 %v754
  %792 = vmatprep.subr.bf16.mxu0 0
  %793 = vmatpush1.bf16.msra.mxu0 %v755
  %794 = vmatprep.subr.bf16.mxu0 0
  %795 = vmatpush1.bf16.msra.mxu0 %v756
  %796 = vmatprep.subr.bf16.mxu0 0
  %797 = vmatpush1.bf16.msra.mxu0 %v757
  %798 = vmatprep.subr.bf16.mxu0 0
  %799 = vmatpush1.bf16.msra.mxu0 %v758
  %800 = vmatprep.subr.bf16.mxu0 0
  %801 = vmatpush1.bf16.msra.mxu0 %v759
  %802 = vmatprep.subr.bf16.mxu0 0
  %803 = vmatpush1.bf16.msra.mxu0 %v760
  %804 = vmatprep.subr.bf16.mxu0 0
  %805 = vmatpush1.bf16.msra.mxu0 %v761
  %806 = vmatprep.subr.bf16.mxu0 0
  %807 = vmatpush1.bf16.msra.mxu0 %v762
  %808 = vmatprep.subr.bf16.mxu0 0
  %809 = vmatpush1.bf16.msra.mxu0 %v763
  %810 = vmatprep.subr.bf16.mxu0 0
  %811 = vmatpush1.bf16.msra.mxu0 %v764
  %812 = vmatprep.subr.bf16.mxu0 0
  %813 = vmatpush1.bf16.msra.mxu0 %v765
  %814 = vmatprep.mubr.bf16.mxu0 %v607
  %815 = vmatmul.mubr.bf16.gmra.mrb[0].mxu0 %v649
  %v816 = vpop.f32.mrb[0].mxu0
  %v817 = vadd.f32 %v685, %v816
  %v818 = vpop.f32.mrb[0].mxu0
  %v819 = vpop.f32.mrb[0].mxu0
  %v820 = vadd.f32 %v685, %v819
  %v821 = vpop.f32.mrb[0].mxu0
  %822 = vdwg.mxu0
  %vm823 = vcmp.gt.f32.partialorder %v817, 0.0
  %vm824 = vcmp.gt.f32.partialorder %v820, 0.0
  %v825 = vmul.f32 %v817, 0.1
  %v826 = vmul.f32 %v820, 0.1
  %v827 = vsel %vm823, %v817, %v825
  %v828 = vsel %vm824, %v820, %v826
  %v829 = vpack.c.bf16 %v828, %v827
  %830 = vmatprep.subr.bf16.mxu0 0
  %831 = vmatpush1.bf16.msra.mxu0 %v829
  %832 = vmatprep.subr.bf16.mxu0 0
  %833 = vmatpush1.bf16.msra.mxu0 0
  %834 = vmatprep.subr.bf16.mxu0 0
  %835 = vmatpush1.bf16.msra.mxu0 0
  %836 = vmatprep.subr.bf16.mxu0 0
  %837 = vmatpush1.bf16.msra.mxu0 0
  %838 = vmatprep.subr.bf16.mxu0 0
  %839 = vmatpush1.bf16.msra.mxu0 0
  %840 = vmatprep.subr.bf16.mxu0 0
  %841 = vmatpush1.bf16.msra.mxu0 0
  %842 = vmatprep.subr.bf16.mxu0 0
  %843 = vmatpush1.bf16.msra.mxu0 0
  %844 = vmatprep.subr.bf16.mxu0 0
  %845 = vmatpush1.bf16.msra.mxu0 0
  %846 = vmatprep.subr.bf16.mxu0 0
  %847 = vmatpush1.bf16.msra.mxu0 0
  %848 = vmatprep.subr.bf16.mxu0 0
  %849 = vmatpush1.bf16.msra.mxu0 0
  %850 = vmatprep.subr.bf16.mxu0 0
  %851 = vmatpush1.bf16.msra.mxu0 0
  %852 = vmatprep.subr.bf16.mxu0 0
  %853 = vmatpush1.bf16.msra.mxu0 0
  %854 = vmatprep.subr.bf16.mxu0 0
  %855 = vmatpush1.bf16.msra.mxu0 0
  %856 = vmatprep.subr.bf16.mxu0 0
  %857 = vmatpush1.bf16.msra.mxu0 0
  %858 = vmatprep.subr.bf16.mxu0 0
  %859 = vmatpush1.bf16.msra.mxu0 0
  %860 = vmatprep.subr.bf16.mxu0 0
  %861 = vmatpush1.bf16.msra.mxu0 0
  %862 = vmatprep.mubr.bf16.mxu0 0
  %863 = vmatmul.mubr.bf16.gmra.mrb[0].mxu0 %v384
  %v864 = vpop.f32.mrb[0].mxu0
  %v865 = vadd.f32 0.0, %v864
  %v866 = vpop.f32.mrb[0].mxu0
  %v867 = vpop.f32.mrb[0].mxu0
  %v868 = vadd.f32 0.0, %v867
  %v869 = vpop.f32.mrb[0].mxu0
  %870 = vdwg.mxu0
  %v871 = vpack.c.bf16 %v868, %v865
  %v872 = vld [vmem:[%s2 + $0x1c0] sm:$0xf]
  %v873 = vld [vmem:[%s2 + $0x1c4] sm:$0xf]
  %v874 = vld [vmem:[%s2 + $0x1c8] sm:$0xf]
  %v875 = vld [vmem:[%s2 + $0x1cc] sm:$0xf]
  %v876 = vld [vmem:[%s2 + $0x1d0] sm:$0xf]
  %v877 = vld [vmem:[%s2 + $0x1d4] sm:$0xf]
  %v878 = vld [vmem:[%s2 + $0x1d8] sm:$0xf]
  %v879 = vld [vmem:[%s2 + $0x1dc] sm:$0xf]
  %v880 = vld [vmem:[%s2 + $0x1e0] sm:$0xf]
  %v881 = vld [vmem:[%s2 + $0x1e4] sm:$0xf]
  %v882 = vld [vmem:[%s2 + $0x1e8] sm:$0xf]
  %v883 = vld [vmem:[%s2 + $0x1ec] sm:$0xf]
  %v884 = vld [vmem:[%s2 + $0x1f0] sm:$0xf]
  %v885 = vld [vmem:[%s2 + $0x1f4] sm:$0xf]
  %v886 = vld [vmem:[%s2 + $0x1f8] sm:$0xf]
  %v887 = vld [vmem:[%s2 + $0x1fc] sm:$0xf]
  %v888 = vld [vmem:[%s2 + $0x200] sm:$0xf]
  %v889 = vld [vmem:[%s2 + $0x204] sm:$0xf]
  %v890 = vld [vmem:[%s2 + $0x208] sm:$0xf]
  %v891 = vld [vmem:[%s2 + $0x20c] sm:$0xf]
  %v892 = vld [vmem:[%s2 + $0x210] sm:$0xf]
  %v893 = vld [vmem:[%s2 + $0x214] sm:$0xf]
  %v894 = vld [vmem:[%s2 + $0x218] sm:$0xf]
  %v895 = vld [vmem:[%s2 + $0x21c] sm:$0xf]
  %v896 = vld [vmem:[%s2 + $0x220] sm:$0xf]
  %v897 = vld [vmem:[%s2 + $0x224] sm:$0xf]
  %v898 = vld [vmem:[%s2 + $0x228] sm:$0xf]
  %v899 = vld [vmem:[%s2 + $0x22c] sm:$0xf]
  %v900 = vld [vmem:[%s2 + $0x230] sm:$0xf]
  %v901 = vld [vmem:[%s2 + $0x234] sm:$0xf]
  %v902 = vld [vmem:[%s2 + $0x238] sm:$0xf]
  %v903 = vld [vmem:[%s2 + $0x23c] sm:$0xf]
  %v904 = vlaneseq
  %v905 = vshrl.u32 %v904, 7
  %v906 = vsub.s32 5, %v905
  %v907 = vrot.slane %v18, %v906
  %v940 = vunpack.c.l.b16 %v872
  %v941 = vunpack.c.l.b16 %v873
  %v942 = vunpack.c.l.b16 %v874
  %v943 = vunpack.c.l.b16 %v875
  %v944 = vunpack.c.l.b16 %v876
  %v945 = vunpack.c.l.b16 %v877
  %v946 = vunpack.c.l.b16 %v878
  %v947 = vunpack.c.l.b16 %v879
  %v948 = vunpack.c.l.b16 %v880
  %v949 = vunpack.c.l.b16 %v881
  %v950 = vunpack.c.l.b16 %v882
  %v951 = vunpack.c.l.b16 %v883
  %v952 = vunpack.c.l.b16 %v884
  %v953 = vunpack.c.l.b16 %v885
  %v954 = vunpack.c.l.b16 %v886
  %v955 = vunpack.c.l.b16 %v887
  %v956 = vunpack.c.l.b16 %v888
  %v957 = vunpack.c.l.b16 %v889
  %v958 = vunpack.c.l.b16 %v890
  %v959 = vunpack.c.l.b16 %v891
  %v960 = vunpack.c.l.b16 %v892
  %v961 = vunpack.c.l.b16 %v893
  %v962 = vunpack.c.l.b16 %v894
  %v963 = vunpack.c.l.b16 %v895
  %v964 = vunpack.c.l.b16 %v896
  %v965 = vunpack.c.l.b16 %v897
  %v966 = vunpack.c.l.b16 %v898
  %v967 = vunpack.c.l.b16 %v899
  %v968 = vunpack.c.l.b16 %v900
  %v969 = vunpack.c.l.b16 %v901
  %v970 = vunpack.c.l.b16 %v902
  %v971 = vunpack.c.l.b16 %v903
  %v972 = vpack.c.b16 %v941, %v940
  %v973 = vpack.c.b16 %v943, %v942
  %v974 = vpack.c.b16 %v945, %v944
  %v975 = vpack.c.b16 %v947, %v946
  %v976 = vpack.c.b16 %v949, %v948
  %v977 = vpack.c.b16 %v951, %v950
  %v978 = vpack.c.b16 %v953, %v952
  %v979 = vpack.c.b16 %v955, %v954
  %v980 = vpack.c.b16 %v957, %v956
  %v981 = vpack.c.b16 %v959, %v958
  %v982 = vpack.c.b16 %v961, %v960
  %v983 = vpack.c.b16 %v963, %v962
  %v984 = vpack.c.b16 %v965, %v964
  %v985 = vpack.c.b16 %v967, %v966
  %v986 = vpack.c.b16 %v969, %v968
  %v987 = vpack.c.b16 %v971, %v970
  %1004 = vmatprep.subr.bf16.mxu0 0
  %1005 = vmatpush1.bf16.msra.mxu0 %v972
  %1006 = vmatprep.subr.bf16.mxu0 0
  %1007 = vmatpush1.bf16.msra.mxu0 %v973
  %1008 = vmatprep.subr.bf16.mxu0 0
  %1009 = vmatpush1.bf16.msra.mxu0 %v974
  %1010 = vmatprep.subr.bf16.mxu0 0
  %1011 = vmatpush1.bf16.msra.mxu0 %v975
  %1012 = vmatprep.subr.bf16.mxu0 0
  %1013 = vmatpush1.bf16.msra.mxu0 %v976
  %1014 = vmatprep.subr.bf16.mxu0 0
  %1015 = vmatpush1.bf16.msra.mxu0 %v977
  %1016 = vmatprep.subr.bf16.mxu0 0
  %1017 = vmatpush1.bf16.msra.mxu0 %v978
  %1018 = vmatprep.subr.bf16.mxu0 0
  %1019 = vmatpush1.bf16.msra.mxu0 %v979
  %1020 = vmatprep.subr.bf16.mxu0 0
  %1021 = vmatpush1.bf16.msra.mxu0 %v980
  %1022 = vmatprep.subr.bf16.mxu0 0
  %1023 = vmatpush1.bf16.msra.mxu0 %v981
  %1024 = vmatprep.subr.bf16.mxu0 0
  %1025 = vmatpush1.bf16.msra.mxu0 %v982
  %1026 = vmatprep.subr.bf16.mxu0 0
  %1027 = vmatpush1.bf16.msra.mxu0 %v983
  %1028 = vmatprep.subr.bf16.mxu0 0
  %1029 = vmatpush1.bf16.msra.mxu0 %v984
  %1030 = vmatprep.subr.bf16.mxu0 0
  %1031 = vmatpush1.bf16.msra.mxu0 %v985
  %1032 = vmatprep.subr.bf16.mxu0 0
  %1033 = vmatpush1.bf16.msra.mxu0 %v986
  %1034 = vmatprep.subr.bf16.mxu0 0
  %1035 = vmatpush1.bf16.msra.mxu0 %v987
  %1036 = vmatprep.mubr.bf16.mxu0 %v829
  %1037 = vmatmul.mubr.bf16.gmra.mrb[0].mxu0 %v871
  %v1038 = vpop.f32.mrb[0].mxu0
  %v1039 = vadd.f32 %v907, %v1038
  %v1040 = vpop.f32.mrb[0].mxu0
  %v1041 = vpop.f32.mrb[0].mxu0
  %v1042 = vadd.f32 %v907, %v1041
  %v1043 = vpop.f32.mrb[0].mxu0
  %1044 = vdwg.mxu0
  %vm1045 = vcmp.gt.f32.partialorder %v1039, 0.0
  %vm1046 = vcmp.gt.f32.partialorder %v1042, 0.0
  %v1047 = vmul.f32 %v1039, 0.1
  %v1048 = vmul.f32 %v1042, 0.1
  %v1049 = vsel %vm1045, %v1039, %v1047
  %v1050 = vsel %vm1046, %v1042, %v1048
  %v1051 = vpack.c.bf16 %v1050, %v1049
  %v1052 = vld [vmem:[%s2 + $0x240] sm:$0xf]
  %v1053 = vld [vmem:[%s2 + $0x244] sm:$0xf]
  %v1054 = vld [vmem:[%s2 + $0x248] sm:$0xf]
  %v1055 = vld [vmem:[%s2 + $0x24c] sm:$0xf]
  %v1056 = vld [vmem:[%s2 + $0x250] sm:$0xf]
  %v1057 = vld [vmem:[%s2 + $0x254] sm:$0xf]
  %v1058 = vld [vmem:[%s2 + $0x258] sm:$0xf]
  %v1059 = vld [vmem:[%s2 + $0x25c] sm:$0xf]
  %v1060 = vld [vmem:[%s2 + $0x260] sm:$0xf]
  %v1061 = vld [vmem:[%s2 + $0x264] sm:$0xf]
  %v1062 = vld [vmem:[%s2 + $0x268] sm:$0xf]
  %v1063 = vld [vmem:[%s2 + $0x26c] sm:$0xf]
  %v1064 = vld [vmem:[%s2 + $0x270] sm:$0xf]
  %v1065 = vld [vmem:[%s2 + $0x274] sm:$0xf]
  %v1066 = vld [vmem:[%s2 + $0x278] sm:$0xf]
  %v1067 = vld [vmem:[%s2 + $0x27c] sm:$0xf]
  %v1068 = vlaneseq
  %v1069 = vshrl.u32 %v1068, 7
  %v1070 = vsub.s32 6, %v1069
  %v1071 = vrot.slane %v18, %v1070
  %v1088 = vunpack.c.l.b16 %v1052
  %v1089 = vunpack.c.l.b16 %v1053
  %v1090 = vunpack.c.l.b16 %v1054
  %v1091 = vunpack.c.l.b16 %v1055
  %v1092 = vunpack.c.l.b16 %v1056
  %v1093 = vunpack.c.l.b16 %v1057
  %v1094 = vunpack.c.l.b16 %v1058
  %v1095 = vunpack.c.l.b16 %v1059
  %v1096 = vunpack.c.l.b16 %v1060
  %v1097 = vunpack.c.l.b16 %v1061
  %v1098 = vunpack.c.l.b16 %v1062
  %v1099 = vunpack.c.l.b16 %v1063
  %v1100 = vunpack.c.l.b16 %v1064
  %v1101 = vunpack.c.l.b16 %v1065
  %v1102 = vunpack.c.l.b16 %v1066
  %v1103 = vunpack.c.l.b16 %v1067
  %v1104 = vpack.c.b16 %v1089, %v1088
  %v1105 = vpack.c.b16 %v1091, %v1090
  %v1106 = vpack.c.b16 %v1093, %v1092
  %v1107 = vpack.c.b16 %v1095, %v1094
  %v1108 = vpack.c.b16 %v1097, %v1096
  %v1109 = vpack.c.b16 %v1099, %v1098
  %v1110 = vpack.c.b16 %v1101, %v1100
  %v1111 = vpack.c.b16 %v1103, %v1102
  %1120 = vmatprep.subr.bf16.mxu0 0
  %1121 = vmatpush1.bf16.msra.mxu0 %v1104
  %1122 = vmatprep.subr.bf16.mxu0 0
  %1123 = vmatpush1.bf16.msra.mxu0 %v1105
  %1124 = vmatprep.subr.bf16.mxu0 0
  %1125 = vmatpush1.bf16.msra.mxu0 %v1106
  %1126 = vmatprep.subr.bf16.mxu0 0
  %1127 = vmatpush1.bf16.msra.mxu0 %v1107
  %1128 = vmatprep.subr.bf16.mxu0 0
  %1129 = vmatpush1.bf16.msra.mxu0 %v1108
  %1130 = vmatprep.subr.bf16.mxu0 0
  %1131 = vmatpush1.bf16.msra.mxu0 %v1109
  %1132 = vmatprep.subr.bf16.mxu0 0
  %1133 = vmatpush1.bf16.msra.mxu0 %v1110
  %1134 = vmatprep.subr.bf16.mxu0 0
  %1135 = vmatpush1.bf16.msra.mxu0 %v1111
  %1136 = vmatprep.subr.bf16.mxu0 0
  %1137 = vmatpush1.bf16.msra.mxu0 0
  %1138 = vmatprep.subr.bf16.mxu0 0
  %1139 = vmatpush1.bf16.msra.mxu0 0
  %1140 = vmatprep.subr.bf16.mxu0 0
  %1141 = vmatpush1.bf16.msra.mxu0 0
  %1142 = vmatprep.subr.bf16.mxu0 0
  %1143 = vmatpush1.bf16.msra.mxu0 0
  %1144 = vmatprep.subr.bf16.mxu0 0
  %1145 = vmatpush1.bf16.msra.mxu0 0
  %1146 = vmatprep.subr.bf16.mxu0 0
  %1147 = vmatpush1.bf16.msra.mxu0 0
  %1148 = vmatprep.subr.bf16.mxu0 0
  %1149 = vmatpush1.bf16.msra.mxu0 0
  %1150 = vmatprep.subr.bf16.mxu0 0
  %1151 = vmatpush1.bf16.msra.mxu0 0
  %1152 = vmatprep.mubr.bf16.mxu0 0
  %1153 = vmatmul.mubr.bf16.gmra.mrb[0].mxu0 %v1051
  %v1154 = vpop.f32.mrb[0].mxu0
  %v1155 = vadd.f32 %v1071, %v1154
  %v1156 = vpop.f32.mrb[0].mxu0
  %v1157 = vpop.f32.mrb[0].mxu0
  %v1158 = vadd.f32 %v1071, %v1157
  %v1159 = vpop.f32.mrb[0].mxu0
  %1160 = vdwg.mxu0
  %1161 = vst [vmem:[%s4] sm:$0xff] %v1155
  %1162 = vst [vmem:[%s4 + $0x8] sm:$0xff] %v1158
  // Predicated region
  $region18: #{lsp_conditional_gnn_forward.1} parent=0 // pred_check
    _
  $region19: #{lsp_conditional_gnn_forward.1} parent=0 // pred_check_branch
    %1164 = sbr.rel (0) target = $region21
  $region20: #{lsp_conditional_gnn_forward.1} parent=0 // pred_region
    _
  $region21: #{lsp_conditional_gnn_forward.1} parent=0 // pred_fallthru
    _
  // Predicated region
  $region22: #{lsp_conditional_gnn_forward.1} parent=0 // pred_check
    _
  $region23: #{lsp_conditional_gnn_forward.1} parent=0 // pred_check_branch
    %1166 = sbr.rel (0) target = $region25
  $region24: #{lsp_conditional_gnn_forward.1} parent=0 // pred_region
    _
  $region25: #{lsp_conditional_gnn_forward.1} parent=0 // pred_fallthru
    _

</llo_original>
